<compile_context>
chip_gen: v6e
topology: v6e:2x2x1
jax: 0.10.0
libtpu: 0.0.40
codegen_flags: <defaults>
</compile_context>

<pallas_src>
import functools

import numpy as np
import jax
import jax.numpy as jnp
from jax.experimental import pallas as pl
from jax.experimental.pallas import tpu as pltpu

F32 = jnp.float32
BF16 = jnp.bfloat16
BN_EPS = 1e-5
LANES = 128


def _round8(n):
    return (n + 7) // 8 * 8


# ------------------------------------------------------------------ kernel --

def _gnn_kernel(x_ref, adj_ref, p_ref, o_ref, *, offs, inv_bn):
    """offs: {name: (row_start, rows, cols)} static slots inside the packed
    parameter buffer (row_start is a multiple of 8, lanes start at 0)."""

    def param(name):
        r0, r, c = offs[name]
        return p_ref[r0:r0 + r, 0:c]          # static slice -> free ref view

    def mdot(a, b):
        # bf16 MXU operands (binary adjacency is exact), f32 accumulation.
        return jnp.dot(a.astype(BF16), b.astype(BF16),
                       preferred_element_type=F32)

    x0 = x_ref[...]                            # [B*N, Cin]  f32
    adj = adj_ref[...]                         # [B*N, B*N]  block-diagonal

    def graph_conv(x2d, lvl):
        # DenseGraphConv (aggr='add'):  lin_rel(adj @ x) + lin_root(x) + bias
        # One aggregation matmul for all batches (block-diag adj), and two
        # separate dots against the wr / wo weight blocks (no lane concat).
        agg = mdot(adj, x2d)                   # [B*N, C]
        return (mdot(agg, param(f"w{lvl}r"))
                + mdot(x2d, param(f"w{lvl}o"))
                + param(f"w{lvl}b"))

    # ---- Level 1: grconv1 -> relu --------------------------------------
    x1 = jnp.maximum(graph_conv(x0, 1), 0.0)

    # ---- Level 2: grconv2 -> relu -> BatchNorm (batch stats) -> relu ----
    h2 = jnp.maximum(graph_conv(x1, 2), 0.0)
    mean = jnp.sum(h2, axis=0, keepdims=True) * inv_bn
    mean_sq = jnp.sum(h2 * h2, axis=0, keepdims=True) * inv_bn
    var = mean_sq - mean * mean                # biased var (torch BN training)
    scale = jax.lax.rsqrt(var + BN_EPS) * param("g2")
    x2 = jnp.maximum((h2 - mean) * scale + param("be2"), 0.0)

    # ---- Level 3: grconv3 -> relu ---------------------------------------
    x3 = jnp.maximum(graph_conv(x2, 3), 0.0)

    # ---- Final Linear over concat([x1,x2,x3]) as three row-block matmuls -
    out = (mdot(x1, param("wlA")) + mdot(x2, param("wlB"))
           + mdot(x3, param("wlC")) + param("bl"))
    o_ref[...] = jnp.maximum(out, 0.0)


# ----------------------------------------------------------------- wrapper --

def make_gnn_forward(offs, cout):
    @jax.jit
    def fwd(pbuf, x, adj):
        B, N, _ = x.shape
        x2d = x.reshape(B * N, -1).astype(F32)             # x0 = x.float()
        # Block-diagonal adjacency: one aggregation matmul per level in-kernel.
        adj_bd = jnp.zeros((B * N, B * N), F32)
        for b in range(B):
            adj_bd = adj_bd.at[b * N:(b + 1) * N, b * N:(b + 1) * N].set(
                adj[b].astype(F32))
        vmem = pl.BlockSpec(memory_space=pltpu.MemorySpace.VMEM)
        out = pl.pallas_call(
            functools.partial(_gnn_kernel, offs=offs, inv_bn=1.0 / (B * N)),
            out_shape=jax.ShapeDtypeStruct((B * N, cout), F32),
            in_specs=[vmem, vmem, vmem],       # 3 DMAs total
            out_specs=vmem,
        )(x2d, adj_bd, pbuf)
        return out.reshape(B, N, cout)
    return fwd


# ------------------------------------------------------------------ params --

def init_params(key, cin, hid, heads, cout):
    keys = iter(jax.random.split(key, 32))

    def w(shape):
        return 0.1 * jax.random.normal(next(keys), shape, F32)

    def b(n):
        return 0.05 * jax.random.normal(next(keys), (1, n), F32)

    h1 = hid * heads            # hidden_channels * attn_heads
    h2 = hid * (heads // 4)     # hidden_channels * (attn_heads // 4)

    named = [
        # DenseGraphConv level 1/2/3: lin_rel weight, lin_root weight (no bias), bias
        ("w1r", w((cin, h1))), ("w1o", w((cin, h1))), ("w1b", b(h1)),
        ("w2r", w((h1, h2))), ("w2o", w((h1, h2))), ("w2b", b(h2)),
        ("g2", jnp.ones((1, h2), F32)), ("be2", jnp.zeros((1, h2), F32)),  # BatchNorm(h2)
        ("w3r", w((h2, cout))), ("w3o", w((h2, cout))), ("w3b", b(cout)),
        # Final Linear split into the row blocks consumed by x1 / x2 / x3.
        ("wlA", w((h1, cout))), ("wlB", w((h2, cout))), ("wlC", w((cout, cout))),
        ("bl", b(cout)),
    ]

    # Pack everything into ONE [rows, 128] f32 buffer, 8-row-aligned slots.
    offs = {}
    row = 0
    for name, a in named:
        r, c = a.shape
        assert c <= LANES
        offs[name] = (row, r, c)
        row += _round8(r)
    buf = np.zeros((row, LANES), np.float32)
    for name, a in named:
        r0, r, c = offs[name]
        buf[r0:r0 + r, :c] = np.asarray(a)
    return jnp.asarray(buf), offs


# -------------------------------------------------------- pure-JAX reference --

def ref_forward(pbuf, offs, x, adj):
    def P(name):
        r0, r, c = offs[name]
        return pbuf[r0:r0 + r, :c]

    B, N, _ = x.shape
    x0 = x.astype(F32)
    adjf = adj.astype(F32)

    def gconv(xb, lvl):
        agg = jnp.einsum("bij,bjc->bic", adjf, xb)
        return agg @ P(f"w{lvl}r") + xb @ P(f"w{lvl}o") + P(f"w{lvl}b")

    x1 = jax.nn.relu(gconv(x0, 1))
    h2 = jax.nn.relu(gconv(x1, 2)).reshape(B * N, -1)
    mean = h2.mean(0)
    var = h2.var(0)
    x2f = jax.nn.relu((h2 - mean) * jax.lax.rsqrt(var + BN_EPS) * P("g2") + P("be2"))
    x2 = x2f.reshape(B, N, -1)
    x3 = jax.nn.relu(gconv(x2, 3))
    return jax.nn.relu(x1 @ P("wlA") + x2 @ P("wlB") + x3 @ P("wlC") + P("bl"))


# -------------------------------------------------------------------- main --

if __name__ == "__main__":
    B, N = 2, 8
    IN, HIDDEN, HEADS, OUT = 16, 8, 4, 16      # droprate = 0.0, lin=True

    key = jax.random.PRNGKey(0)
    kx, ka, kp = jax.random.split(key, 3)
    x = jax.random.normal(kx, (B, N, IN), F32)
    a = (jax.random.uniform(ka, (B, N, N)) < 0.4).astype(F32)
    adj = jnp.maximum(a, jnp.swapaxes(a, 1, 2))   # symmetric binary adjacency

    pbuf, offs = init_params(kp, IN, HIDDEN, HEADS, OUT)
    gnn_forward = make_gnn_forward(offs, OUT)

    out = gnn_forward(pbuf, x, adj)
    jax.block_until_ready(out)
    assert out.shape == (B, N, OUT)
    assert bool(jnp.all(jnp.isfinite(out)))

    # Correctness vs f32 pure-JAX reference (loose tol covers bf16 MXU operands).
    ref = ref_forward(pbuf, offs, x, adj)
    assert bool(jnp.allclose(out, ref, rtol=1e-1, atol=1e-1)), "mismatch vs reference"

    print("KERNEL_OK")
</pallas_src>

<mosaic_0001>
module attributes {stable_mosaic.version = 11 : i64} {
  func.func @_gnn_kernel(%arg0: memref<16x16xf32, #tpu.memory_space<vmem>>, %arg1: memref<16x16xf32, #tpu.memory_space<vmem>>, %arg2: memref<216x128xf32, #tpu.memory_space<vmem>>, %arg3: memref<16x16xf32, #tpu.memory_space<vmem>>) attributes {dimension_semantics = [], scalar_prefetch = 0 : i64, scratch_operands = 0 : i64, tpu.core_type = #tpu.core_type<tc>} {
    %c0 = arith.constant 0 : index
    %c0_0 = arith.constant 0 : index
    %0 = vector.load %arg0[%c0, %c0_0] : memref<16x16xf32, #tpu.memory_space<vmem>>, vector<16x16xf32>
    %c0_1 = arith.constant 0 : index
    %c0_2 = arith.constant 0 : index
    %1 = vector.load %arg1[%c0_1, %c0_2] : memref<16x16xf32, #tpu.memory_space<vmem>>, vector<16x16xf32>
    %2 = arith.truncf %1 : vector<16x16xf32> to vector<16x16xbf16>
    %3 = arith.truncf %0 : vector<16x16xf32> to vector<16x16xbf16>
    %cst = arith.constant dense<0.000000e+00> : vector<16x16xf32>
    %4 = tpu.matmul %2, %3, %cst {dimension_numbers = #tpu.dot_dimension_numbers<[1], [0], [0], [1], [0, 0, 1, 1], [], []>} : vector<16x16xbf16>, vector<16x16xbf16>, vector<16x16xf32> -> vector<16x16xf32>
    %c0_3 = arith.constant 0 : index
    %c0_4 = arith.constant 0 : index
    %5 = vector.load %arg2[%c0_3, %c0_4] : memref<216x128xf32, #tpu.memory_space<vmem>>, vector<16x32xf32>
    %6 = arith.truncf %4 : vector<16x16xf32> to vector<16x16xbf16>
    %7 = arith.truncf %5 : vector<16x32xf32> to vector<16x32xbf16>
    %cst_5 = arith.constant dense<0.000000e+00> : vector<16x32xf32>
    %8 = tpu.matmul %6, %7, %cst_5 {dimension_numbers = #tpu.dot_dimension_numbers<[1], [0], [0], [1], [0, 0, 1, 1], [], []>} : vector<16x16xbf16>, vector<16x32xbf16>, vector<16x32xf32> -> vector<16x32xf32>
    %c16 = arith.constant 16 : index
    %c0_6 = arith.constant 0 : index
    %9 = vector.load %arg2[%c16, %c0_6] : memref<216x128xf32, #tpu.memory_space<vmem>>, vector<16x32xf32>
    %10 = arith.truncf %0 : vector<16x16xf32> to vector<16x16xbf16>
    %11 = arith.truncf %9 : vector<16x32xf32> to vector<16x32xbf16>
    %cst_7 = arith.constant dense<0.000000e+00> : vector<16x32xf32>
    %12 = tpu.matmul %10, %11, %cst_7 {dimension_numbers = #tpu.dot_dimension_numbers<[1], [0], [0], [1], [0, 0, 1, 1], [], []>} : vector<16x16xbf16>, vector<16x32xbf16>, vector<16x32xf32> -> vector<16x32xf32>
    %13 = arith.addf %8, %12 : vector<16x32xf32>
    %c32 = arith.constant 32 : index
    %c0_8 = arith.constant 0 : index
    %14 = vector.load %arg2[%c32, %c0_8] : memref<216x128xf32, #tpu.memory_space<vmem>>, vector<1x32xf32>
    %15 = vector.broadcast %14 : vector<1x32xf32> to vector<16x32xf32>
    %16 = arith.addf %13, %15 : vector<16x32xf32>
    %cst_9 = arith.constant 0.000000e+00 : f32
    %17 = vector.broadcast %cst_9 : f32 to vector<16x32xf32>
    %18 = arith.maximumf %16, %17 : vector<16x32xf32>
    %19 = arith.truncf %1 : vector<16x16xf32> to vector<16x16xbf16>
    %20 = arith.truncf %18 : vector<16x32xf32> to vector<16x32xbf16>
    %cst_10 = arith.constant dense<0.000000e+00> : vector<16x32xf32>
    %21 = tpu.matmul %19, %20, %cst_10 {dimension_numbers = #tpu.dot_dimension_numbers<[1], [0], [0], [1], [0, 0, 1, 1], [], []>} : vector<16x16xbf16>, vector<16x32xbf16>, vector<16x32xf32> -> vector<16x32xf32>
    %c40 = arith.constant 40 : index
    %c0_11 = arith.constant 0 : index
    %22 = vector.load %arg2[%c40, %c0_11] : memref<216x128xf32, #tpu.memory_space<vmem>>, vector<32x8xf32>
    %23 = arith.truncf %21 : vector<16x32xf32> to vector<16x32xbf16>
    %24 = arith.truncf %22 : vector<32x8xf32> to vector<32x8xbf16>
    %cst_12 = arith.constant dense<0.000000e+00> : vector<16x8xf32>
    %25 = tpu.matmul %23, %24, %cst_12 {dimension_numbers = #tpu.dot_dimension_numbers<[1], [0], [0], [1], [0, 0, 1, 1], [], []>} : vector<16x32xbf16>, vector<32x8xbf16>, vector<16x8xf32> -> vector<16x8xf32>
    %c72 = arith.constant 72 : index
    %c0_13 = arith.constant 0 : index
    %26 = vector.load %arg2[%c72, %c0_13] : memref<216x128xf32, #tpu.memory_space<vmem>>, vector<32x8xf32>
    %27 = arith.truncf %18 : vector<16x32xf32> to vector<16x32xbf16>
    %28 = arith.truncf %26 : vector<32x8xf32> to vector<32x8xbf16>
    %cst_14 = arith.constant dense<0.000000e+00> : vector<16x8xf32>
    %29 = tpu.matmul %27, %28, %cst_14 {dimension_numbers = #tpu.dot_dimension_numbers<[1], [0], [0], [1], [0, 0, 1, 1], [], []>} : vector<16x32xbf16>, vector<32x8xbf16>, vector<16x8xf32> -> vector<16x8xf32>
    %30 = arith.addf %25, %29 : vector<16x8xf32>
    %c104 = arith.constant 104 : index
    %c0_15 = arith.constant 0 : index
    %31 = vector.load %arg2[%c104, %c0_15] : memref<216x128xf32, #tpu.memory_space<vmem>>, vector<1x8xf32>
    %32 = vector.broadcast %31 : vector<1x8xf32> to vector<16x8xf32>
    %33 = arith.addf %30, %32 : vector<16x8xf32>
    %cst_16 = arith.constant 0.000000e+00 : f32
    %34 = vector.broadcast %cst_16 : f32 to vector<16x8xf32>
    %35 = arith.maximumf %33, %34 : vector<16x8xf32>
    %cst_17 = arith.constant dense<0.000000e+00> : vector<8xf32>
    %36 = vector.multi_reduction <add>, %35, %cst_17 [0] : vector<16x8xf32> to vector<8xf32>
    %37 = vector.shape_cast %36 : vector<8xf32> to vector<1x8xf32>
    %cst_18 = arith.constant 6.250000e-02 : f32
    %38 = vector.broadcast %cst_18 : f32 to vector<1x8xf32>
    %39 = arith.mulf %37, %38 : vector<1x8xf32>
    %40 = arith.mulf %35, %35 : vector<16x8xf32>
    %cst_19 = arith.constant dense<0.000000e+00> : vector<8xf32>
    %41 = vector.multi_reduction <add>, %40, %cst_19 [0] : vector<16x8xf32> to vector<8xf32>
    %42 = vector.shape_cast %41 : vector<8xf32> to vector<1x8xf32>
    %cst_20 = arith.constant 6.250000e-02 : f32
    %43 = vector.broadcast %cst_20 : f32 to vector<1x8xf32>
    %44 = arith.mulf %42, %43 : vector<1x8xf32>
    %45 = arith.mulf %39, %39 : vector<1x8xf32>
    %46 = arith.subf %44, %45 : vector<1x8xf32>
    %cst_21 = arith.constant 9.99999974E-6 : f32
    %47 = vector.broadcast %cst_21 : f32 to vector<1x8xf32>
    %48 = arith.addf %46, %47 : vector<1x8xf32>
    %49 = math.rsqrt %48 : vector<1x8xf32>
    %c112 = arith.constant 112 : index
    %c0_22 = arith.constant 0 : index
    %50 = vector.load %arg2[%c112, %c0_22] : memref<216x128xf32, #tpu.memory_space<vmem>>, vector<1x8xf32>
    %51 = arith.mulf %49, %50 : vector<1x8xf32>
    %52 = vector.broadcast %39 : vector<1x8xf32> to vector<16x8xf32>
    %53 = arith.subf %35, %52 : vector<16x8xf32>
    %54 = vector.broadcast %51 : vector<1x8xf32> to vector<16x8xf32>
    %55 = arith.mulf %53, %54 : vector<16x8xf32>
    %c120 = arith.constant 120 : index
    %c0_23 = arith.constant 0 : index
    %56 = vector.load %arg2[%c120, %c0_23] : memref<216x128xf32, #tpu.memory_space<vmem>>, vector<1x8xf32>
    %57 = vector.broadcast %56 : vector<1x8xf32> to vector<16x8xf32>
    %58 = arith.addf %55, %57 : vector<16x8xf32>
    %cst_24 = arith.constant 0.000000e+00 : f32
    %59 = vector.broadcast %cst_24 : f32 to vector<16x8xf32>
    %60 = arith.maximumf %58, %59 : vector<16x8xf32>
    %61 = arith.truncf %1 : vector<16x16xf32> to vector<16x16xbf16>
    %62 = arith.truncf %60 : vector<16x8xf32> to vector<16x8xbf16>
    %cst_25 = arith.constant dense<0.000000e+00> : vector<16x8xf32>
    %63 = tpu.matmul %61, %62, %cst_25 {dimension_numbers = #tpu.dot_dimension_numbers<[1], [0], [0], [1], [0, 0, 1, 1], [], []>} : vector<16x16xbf16>, vector<16x8xbf16>, vector<16x8xf32> -> vector<16x8xf32>
    %c128 = arith.constant 128 : index
    %c0_26 = arith.constant 0 : index
    %64 = vector.load %arg2[%c128, %c0_26] : memref<216x128xf32, #tpu.memory_space<vmem>>, vector<8x16xf32>
    %65 = arith.truncf %63 : vector<16x8xf32> to vector<16x8xbf16>
    %66 = arith.truncf %64 : vector<8x16xf32> to vector<8x16xbf16>
    %cst_27 = arith.constant dense<0.000000e+00> : vector<16x16xf32>
    %67 = tpu.matmul %65, %66, %cst_27 {dimension_numbers = #tpu.dot_dimension_numbers<[1], [0], [0], [1], [0, 0, 1, 1], [], []>} : vector<16x8xbf16>, vector<8x16xbf16>, vector<16x16xf32> -> vector<16x16xf32>
    %c136 = arith.constant 136 : index
    %c0_28 = arith.constant 0 : index
    %68 = vector.load %arg2[%c136, %c0_28] : memref<216x128xf32, #tpu.memory_space<vmem>>, vector<8x16xf32>
    %69 = arith.truncf %60 : vector<16x8xf32> to vector<16x8xbf16>
    %70 = arith.truncf %68 : vector<8x16xf32> to vector<8x16xbf16>
    %cst_29 = arith.constant dense<0.000000e+00> : vector<16x16xf32>
    %71 = tpu.matmul %69, %70, %cst_29 {dimension_numbers = #tpu.dot_dimension_numbers<[1], [0], [0], [1], [0, 0, 1, 1], [], []>} : vector<16x8xbf16>, vector<8x16xbf16>, vector<16x16xf32> -> vector<16x16xf32>
    %72 = arith.addf %67, %71 : vector<16x16xf32>
    %c144 = arith.constant 144 : index
    %c0_30 = arith.constant 0 : index
    %73 = vector.load %arg2[%c144, %c0_30] : memref<216x128xf32, #tpu.memory_space<vmem>>, vector<1x16xf32>
    %74 = vector.broadcast %73 : vector<1x16xf32> to vector<16x16xf32>
    %75 = arith.addf %72, %74 : vector<16x16xf32>
    %cst_31 = arith.constant 0.000000e+00 : f32
    %76 = vector.broadcast %cst_31 : f32 to vector<16x16xf32>
    %77 = arith.maximumf %75, %76 : vector<16x16xf32>
    %c152 = arith.constant 152 : index
    %c0_32 = arith.constant 0 : index
    %78 = vector.load %arg2[%c152, %c0_32] : memref<216x128xf32, #tpu.memory_space<vmem>>, vector<32x16xf32>
    %79 = arith.truncf %18 : vector<16x32xf32> to vector<16x32xbf16>
    %80 = arith.truncf %78 : vector<32x16xf32> to vector<32x16xbf16>
    %cst_33 = arith.constant dense<0.000000e+00> : vector<16x16xf32>
    %81 = tpu.matmul %79, %80, %cst_33 {dimension_numbers = #tpu.dot_dimension_numbers<[1], [0], [0], [1], [0, 0, 1, 1], [], []>} : vector<16x32xbf16>, vector<32x16xbf16>, vector<16x16xf32> -> vector<16x16xf32>
    %c184 = arith.constant 184 : index
    %c0_34 = arith.constant 0 : index
    %82 = vector.load %arg2[%c184, %c0_34] : memref<216x128xf32, #tpu.memory_space<vmem>>, vector<8x16xf32>
    %83 = arith.truncf %60 : vector<16x8xf32> to vector<16x8xbf16>
    %84 = arith.truncf %82 : vector<8x16xf32> to vector<8x16xbf16>
    %cst_35 = arith.constant dense<0.000000e+00> : vector<16x16xf32>
    %85 = tpu.matmul %83, %84, %cst_35 {dimension_numbers = #tpu.dot_dimension_numbers<[1], [0], [0], [1], [0, 0, 1, 1], [], []>} : vector<16x8xbf16>, vector<8x16xbf16>, vector<16x16xf32> -> vector<16x16xf32>
    %86 = arith.addf %81, %85 : vector<16x16xf32>
    %c192 = arith.constant 192 : index
    %c0_36 = arith.constant 0 : index
    %87 = vector.load %arg2[%c192, %c0_36] : memref<216x128xf32, #tpu.memory_space<vmem>>, vector<16x16xf32>
    %88 = arith.truncf %77 : vector<16x16xf32> to vector<16x16xbf16>
    %89 = arith.truncf %87 : vector<16x16xf32> to vector<16x16xbf16>
    %cst_37 = arith.constant dense<0.000000e+00> : vector<16x16xf32>
    %90 = tpu.matmul %88, %89, %cst_37 {dimension_numbers = #tpu.dot_dimension_numbers<[1], [0], [0], [1], [0, 0, 1, 1], [], []>} : vector<16x16xbf16>, vector<16x16xbf16>, vector<16x16xf32> -> vector<16x16xf32>
    %91 = arith.addf %86, %90 : vector<16x16xf32>
    %c208 = arith.constant 208 : index
    %c0_38 = arith.constant 0 : index
    %92 = vector.load %arg2[%c208, %c0_38] : memref<216x128xf32, #tpu.memory_space<vmem>>, vector<1x16xf32>
    %93 = vector.broadcast %92 : vector<1x16xf32> to vector<16x16xf32>
    %94 = arith.addf %91, %93 : vector<16x16xf32>
    %cst_39 = arith.constant 0.000000e+00 : f32
    %95 = vector.broadcast %cst_39 : f32 to vector<16x16xf32>
    %96 = arith.maximumf %94, %95 : vector<16x16xf32>
    %c0_40 = arith.constant 0 : index
    %c0_41 = arith.constant 0 : index
    %97 = vector.load %arg3[%c0_40, %c0_41] : memref<16x16xf32, #tpu.memory_space<vmem>>, vector<16x16xf32>
    tpu.vector_store %arg3[%c0_40, %c0_41], %96 {strides = array<i32>} : memref<16x16xf32, #tpu.memory_space<vmem>>, vector<16x16xf32>,
    return
  }
}

</mosaic_0001>

<llo_original>
// kernel: fwd.1
$region0: #{fwd.1}
  #allocation0 [shape = 'u32[]', space=smem, size = 0x4, offset = 0x4, fixed_abs, tag = 'smem constant byte address 0x4 - core index']
  #allocation1 [shape = 'u32[144,128]{1,0:T(1,128)}', space=vmem, size = 0x12000, scoped, tag = 'internal scratch']
  %s0 = inlined_call_operand.vmem [shape: f32[16,16], index: 0, kind: input, shape index: {}]
  %s1 = inlined_call_operand.vmem [shape: f32[16,16], index: 1, kind: input, shape index: {}]
  %s2 = inlined_call_operand.hbm [shape: f32[216,128], index: 2, kind: input, shape index: {}]
  %s3 = inlined_call_operand.hbm [shape: f32[16,16], index: 3, kind: output, shape index: {}]
  %s4 = sld [smem:[#allocation0]]
  $region26: #{fwd.1} parent=0
    _
  %s6 = ssub.s32 1, %s4
  %s7 = scalar_select 0, %s6, %s4
  $region1: #{fwd.1} parent=0
    #allocation2 [shape = 'u8[110592]{0}', space=vmem, size = 0x1b000, scoped, tag = 'input window, operand 2, single buffered']
    #allocation3 [shape = 's32[1]{0}', space=sflag, size = 0x4, scoped, tag = 'scoped memory for fwd.1']
    #allocation4 [shape = 's32[1]{0}', space=sflag, size = 0x4, scoped, tag = 'scoped memory for fwd.1']
    #allocation5 [shape = 'u8[8192]{0}', space=vmem, size = 0x2000, scoped, tag = 'output window, operand 0, single buffered']
    %8 = vsyncpa [#allocation3], 0
    %9 = vsyncpa [#allocation4], 0
    // Predicated region
    $region2: #{fwd.1} parent=1 // pred_check
      _
    $region3: #{fwd.1} parent=1 // pred_check_branch
      %11 = sbr.rel (0) target = $region5
    $region4: #{fwd.1} parent=1 // pred_region
      _
    $region5: #{fwd.1} parent=1 // pred_fallthru
      _
    // Predicated region
    $region6: #{fwd.1} parent=1 // pred_check
      _
    $region7: #{fwd.1} parent=1 // pred_check_branch
      %13 = sbr.rel (0) target = $region9
    $region8: #{fwd.1} parent=1 // pred_region
      _
    $region9: #{fwd.1} parent=1 // pred_fallthru
      _
    // Predicated region
    $region10: #{fwd.1} parent=1 // pred_check
      _
    $region11: #{fwd.1} parent=1 // pred_check_branch
      %15 = sbr.rel (0) target = $region13
    $region12: #{fwd.1} parent=1 // pred_region
      %s17 = ssub.s32 3456, 3456
      %18 = vsyncadd [#allocation3], %s17
      %s19 = sshll.u32 [#allocation2], 4
      %s20 = int_to_ptr.vmem [resolvable:$true] %s19
      %25 = dma.hbm_to_vmem [thread:$0]  %s2, 3456, %s20, [#allocation3], 128, 128, 8
    $region13: #{fwd.1} parent=1 // pred_fallthru
      _
    // Predicated region
    $region14: #{fwd.1} parent=1 // pred_check
      _
    $region15: #{fwd.1} parent=1 // pred_check_branch
      %27 = sbr.rel (0) target = $region17
    $region16: #{fwd.1} parent=1 // pred_region
      %28 = dma.done [#allocation3], 3456
    $region17: #{fwd.1} parent=1 // pred_fallthru
      _
    %v30 = vld [vmem:[%s0] sm:$0xff]
    %v31 = vld [vmem:[%s0 + $0x8] sm:$0xff]
    %v32 = vld [vmem:[%s1] sm:$0xff]
    %v33 = vld [vmem:[%s1 + $0x8] sm:$0xff]
    %v34 = vpack.c.bf16 %v33, %v32
    %v35 = vpack.c.bf16 %v31, %v30
    %vm36 = vcmask 130048
    %v38 = vsel %vm36, %v34, 0
    %40 = vmatprep.subr.bf16.mxu0 0
    %41 = vmatpush1.bf16.msra.mxu0 0
    %42 = vmatprep.subr.bf16.mxu0 0
    %43 = vmatpush1.bf16.msra.mxu0 0
    %44 = vmatprep.subr.bf16.mxu0 0
    %45 = vmatpush1.bf16.msra.mxu0 0
    %46 = vmatprep.subr.bf16.mxu0 0
    %47 = vmatpush1.bf16.msra.mxu0 0
    %48 = vmatprep.subr.bf16.mxu0 0
    %49 = vmatpush1.bf16.msra.mxu0 0
    %50 = vmatprep.subr.bf16.mxu0 0
    %51 = vmatpush1.bf16.msra.mxu0 0
    %52 = vmatprep.subr.bf16.mxu0 0
    %53 = vmatpush1.bf16.msra.mxu0 0
    %54 = vmatprep.subr.bf16.mxu0 0
    %55 = vmatpush1.bf16.msra.mxu0 %v35
    %56 = vmatprep.subr.bf16.mxu0 0
    %57 = vmatpush2.bf16.msra.mxu0 0
    %58 = vmatprep.subr.bf16.mxu0 0
    %59 = vmatpush2.bf16.msra.mxu0 0
    %60 = vmatprep.subr.bf16.mxu0 0
    %61 = vmatpush2.bf16.msra.mxu0 0
    %62 = vmatprep.subr.bf16.mxu0 0
    %63 = vmatpush2.bf16.msra.mxu0 0
    %64 = vmatprep.subr.bf16.mxu0 0
    %65 = vmatpush2.bf16.msra.mxu0 0
    %66 = vmatprep.subr.bf16.mxu0 0
    %67 = vmatpush2.bf16.msra.mxu0 0
    %68 = vmatprep.subr.bf16.mxu0 0
    %69 = vmatpush2.bf16.msra.mxu0 0
    %70 = vmatprep.subr.bf16.mxu0 0
    %71 = vmatpush2.bf16.msra.mxu0 0
    %72 = vmatprep.mubr.bf16.mxu0 0
    %73 = vmatmul.mubr.bf16.gmra.mxu0 %v38
    %v74 = vpop.f32.mrf.mxu0
    %v75 = vadd.f32 0.0, %v74
    %v76 = vpop.f32.mrf.mxu0
    %v77 = vpop.f32.mrf.mxu0
    %v78 = vadd.f32 0.0, %v77
    %v79 = vpop.f32.mrf.mxu0
    %80 = vdwg.mxu0
    %v81 = vld [vmem:[#allocation2] sm:$0xff]
    %v82 = vld [vmem:[#allocation2 + $0x8] sm:$0xff]
    %v83 = vpack.c.bf16 %v78, %v75
    %v84 = vpack.c.bf16 %v82, %v81
    %v85 = vld [vmem:[#allocation2 + $0x10] sm:$0xff]
    %v86 = vld [vmem:[#allocation2 + $0x18] sm:$0xff]
    %v87 = vpack.c.bf16 %v86, %v85
    %v89 = vsel %vm36, %v35, 0
    %91 = vmatprep.subr.bf16.mxu0 0
    %92 = vmatpush1.bf16.msra.mxu0 0
    %93 = vmatprep.subr.bf16.mxu0 0
    %94 = vmatpush1.bf16.msra.mxu0 0
    %95 = vmatprep.subr.bf16.mxu0 0
    %96 = vmatpush1.bf16.msra.mxu0 0
    %97 = vmatprep.subr.bf16.mxu0 0
    %98 = vmatpush1.bf16.msra.mxu0 0
    %99 = vmatprep.subr.bf16.mxu0 0
    %100 = vmatpush1.bf16.msra.mxu0 0
    %101 = vmatprep.subr.bf16.mxu0 0
    %102 = vmatpush1.bf16.msra.mxu0 0
    %103 = vmatprep.subr.bf16.mxu0 0
    %104 = vmatpush1.bf16.msra.mxu0 0
    %105 = vmatprep.subr.bf16.mxu0 0
    %106 = vmatpush1.bf16.msra.mxu0 %v87
    %107 = vmatprep.subr.bf16.mxu0 0
    %108 = vmatpush2.bf16.msra.mxu0 0
    %109 = vmatprep.subr.bf16.mxu0 0
    %110 = vmatpush2.bf16.msra.mxu0 0
    %111 = vmatprep.subr.bf16.mxu0 0
    %112 = vmatpush2.bf16.msra.mxu0 0
    %113 = vmatprep.subr.bf16.mxu0 0
    %114 = vmatpush2.bf16.msra.mxu0 0
    %115 = vmatprep.subr.bf16.mxu0 0
    %116 = vmatpush2.bf16.msra.mxu0 0
    %117 = vmatprep.subr.bf16.mxu0 0
    %118 = vmatpush2.bf16.msra.mxu0 0
    %119 = vmatprep.subr.bf16.mxu0 0
    %120 = vmatpush2.bf16.msra.mxu0 0
    %121 = vmatprep.subr.bf16.mxu0 0
    %122 = vmatpush2.bf16.msra.mxu0 0
    %123 = vmatprep.mubr.bf16.mxu0 0
    %124 = vmatmul.mubr.bf16.gmra.mxu0 %v89
    %v125 = vpop.f32.mrf.mxu0
    %v126 = vadd.f32 0.0, %v125
    %v127 = vpop.f32.mrf.mxu0
    %v128 = vpop.f32.mrf.mxu0
    %v129 = vadd.f32 0.0, %v128
    %v130 = vpop.f32.mrf.mxu0
    %131 = vdwg.mxu0
    %v133 = vsel %vm36, %v83, 0
    %135 = vmatprep.subr.bf16.mxu0 0
    %136 = vmatpush1.bf16.msra.mxu0 0
    %137 = vmatprep.subr.bf16.mxu0 0
    %138 = vmatpush1.bf16.msra.mxu0 0
    %139 = vmatprep.subr.bf16.mxu0 0
    %140 = vmatpush1.bf16.msra.mxu0 0
    %141 = vmatprep.subr.bf16.mxu0 0
    %142 = vmatpush1.bf16.msra.mxu0 0
    %143 = vmatprep.subr.bf16.mxu0 0
    %144 = vmatpush1.bf16.msra.mxu0 0
    %145 = vmatprep.subr.bf16.mxu0 0
    %146 = vmatpush1.bf16.msra.mxu0 0
    %147 = vmatprep.subr.bf16.mxu0 0
    %148 = vmatpush1.bf16.msra.mxu0 0
    %149 = vmatprep.subr.bf16.mxu0 0
    %150 = vmatpush1.bf16.msra.mxu0 %v84
    %151 = vmatprep.subr.bf16.mxu0 0
    %152 = vmatpush2.bf16.msra.mxu0 0
    %153 = vmatprep.subr.bf16.mxu0 0
    %154 = vmatpush2.bf16.msra.mxu0 0
    %155 = vmatprep.subr.bf16.mxu0 0
    %156 = vmatpush2.bf16.msra.mxu0 0
    %157 = vmatprep.subr.bf16.mxu0 0
    %158 = vmatpush2.bf16.msra.mxu0 0
    %159 = vmatprep.subr.bf16.mxu0 0
    %160 = vmatpush2.bf16.msra.mxu0 0
    %161 = vmatprep.subr.bf16.mxu0 0
    %162 = vmatpush2.bf16.msra.mxu0 0
    %163 = vmatprep.subr.bf16.mxu0 0
    %164 = vmatpush2.bf16.msra.mxu0 0
    %165 = vmatprep.subr.bf16.mxu0 0
    %166 = vmatpush2.bf16.msra.mxu0 0
    %167 = vmatprep.mubr.bf16.mxu0 0
    %168 = vmatmul.mubr.bf16.gmra.mxu0 %v133
    %v169 = vpop.f32.mrf.mxu0
    %v170 = vadd.f32 %v126, %v169
    %v171 = vpop.f32.mrf.mxu0
    %v172 = vpop.f32.mrf.mxu0
    %v173 = vadd.f32 %v129, %v172
    %v174 = vpop.f32.mrf.mxu0
    %175 = vdwg.mxu0
    %v176 = vld [vmem:[#allocation2 + $0x20] sm:$0x1]
    %v177 = vlaneseq
    %v178 = vshrl.u32 %v177, 7
    %v179 = vsub.s32 0, %v178
    %v180 = vrot.slane %v176, %v179
    %v181 = vadd.f32 %v170, %v180
    %v182 = vadd.f32 %v173, %v180
    %v183 = vmax.f32 %v181, 0.0
    %v184 = vmax.f32 %v182, 0.0
    %v185 = vpack.c.bf16 %v184, %v183
    %186 = vmatprep.subr.bf16.mxu0 0
    %187 = vmatpush1.bf16.msra.mxu0 0
    %188 = vmatprep.subr.bf16.mxu0 0
    %189 = vmatpush1.bf16.msra.mxu0 0
    %190 = vmatprep.subr.bf16.mxu0 0
    %191 = vmatpush1.bf16.msra.mxu0 0
    %192 = vmatprep.subr.bf16.mxu0 0
    %193 = vmatpush1.bf16.msra.mxu0 0
    %194 = vmatprep.subr.bf16.mxu0 0
    %195 = vmatpush1.bf16.msra.mxu0 0
    %196 = vmatprep.subr.bf16.mxu0 0
    %197 = vmatpush1.bf16.msra.mxu0 0
    %198 = vmatprep.subr.bf16.mxu0 0
    %199 = vmatpush1.bf16.msra.mxu0 0
    %200 = vmatprep.subr.bf16.mxu0 0
    %201 = vmatpush1.bf16.msra.mxu0 %v185
    %202 = vmatprep.subr.bf16.mxu0 0
    %203 = vmatpush2.bf16.msra.mxu0 0
    %204 = vmatprep.subr.bf16.mxu0 0
    %205 = vmatpush2.bf16.msra.mxu0 0
    %206 = vmatprep.subr.bf16.mxu0 0
    %207 = vmatpush2.bf16.msra.mxu0 0
    %208 = vmatprep.subr.bf16.mxu0 0
    %209 = vmatpush2.bf16.msra.mxu0 0
    %210 = vmatprep.subr.bf16.mxu0 0
    %211 = vmatpush2.bf16.msra.mxu0 0
    %212 = vmatprep.subr.bf16.mxu0 0
    %213 = vmatpush2.bf16.msra.mxu0 0
    %214 = vmatprep.subr.bf16.mxu0 0
    %215 = vmatpush2.bf16.msra.mxu0 0
    %216 = vmatprep.subr.bf16.mxu0 0
    %217 = vmatpush2.bf16.msra.mxu0 0
    %218 = vmatprep.mubr.bf16.mxu0 0
    %219 = vmatmul.mubr.bf16.gmra.mxu0 %v38
    %v220 = vpop.f32.mrf.mxu0
    %v221 = vadd.f32 0.0, %v220
    %v222 = vpop.f32.mrf.mxu0
    %v223 = vpop.f32.mrf.mxu0
    %v224 = vadd.f32 0.0, %v223
    %v225 = vpop.f32.mrf.mxu0
    %226 = vdwg.mxu0
    %v227 = vld [vmem:[#allocation2 + $0x28] sm:$0xff]
    %v228 = vld [vmem:[#allocation2 + $0x30] sm:$0xff]
    %v229 = vld [vmem:[#allocation2 + $0x38] sm:$0xff]
    %v230 = vld [vmem:[#allocation2 + $0x40] sm:$0xff]
    %v231 = vpack.c.bf16 %v224, %v221
    %v232 = vpack.c.bf16 %v228, %v227
    %v233 = vpack.c.bf16 %v230, %v229
    %v234 = vld [vmem:[#allocation2 + $0x48] sm:$0xff]
    %v235 = vld [vmem:[#allocation2 + $0x50] sm:$0xff]
    %v236 = vld [vmem:[#allocation2 + $0x58] sm:$0xff]
    %v237 = vld [vmem:[#allocation2 + $0x60] sm:$0xff]
    %v238 = vpack.c.bf16 %v235, %v234
    %v239 = vpack.c.bf16 %v237, %v236
    %vm240 = vcmask 261120
    %v242 = vsel %vm240, %v185, 0
    %244 = vmatprep.subr.bf16.mxu0 0
    %245 = vmatpush1.bf16.msra.mxu0 0
    %246 = vmatprep.subr.bf16.mxu0 0
    %247 = vmatpush1.bf16.msra.mxu0 0
    %248 = vmatprep.subr.bf16.mxu0 0
    %249 = vmatpush1.bf16.msra.mxu0 0
    %250 = vmatprep.subr.bf16.mxu0 0
    %251 = vmatpush1.bf16.msra.mxu0 0
    %252 = vmatprep.subr.bf16.mxu0 0
    %253 = vmatpush1.bf16.msra.mxu0 0
    %254 = vmatprep.subr.bf16.mxu0 0
    %255 = vmatpush1.bf16.msra.mxu0 0
    %256 = vmatprep.subr.bf16.mxu0 0
    %257 = vmatpush1.bf16.msra.mxu0 %v239
    %258 = vmatprep.subr.bf16.mxu0 0
    %259 = vmatpush1.bf16.msra.mxu0 %v238
    %260 = vmatprep.subr.bf16.mxu0 0
    %261 = vmatpush2.bf16.msra.mxu0 0
    %262 = vmatprep.subr.bf16.mxu0 0
    %263 = vmatpush2.bf16.msra.mxu0 0
    %264 = vmatprep.subr.bf16.mxu0 0
    %265 = vmatpush2.bf16.msra.mxu0 0
    %266 = vmatprep.subr.bf16.mxu0 0
    %267 = vmatpush2.bf16.msra.mxu0 0
    %268 = vmatprep.subr.bf16.mxu0 0
    %269 = vmatpush2.bf16.msra.mxu0 0
    %270 = vmatprep.subr.bf16.mxu0 0
    %271 = vmatpush2.bf16.msra.mxu0 0
    %272 = vmatprep.subr.bf16.mxu0 0
    %273 = vmatpush2.bf16.msra.mxu0 0
    %274 = vmatprep.subr.bf16.mxu0 0
    %275 = vmatpush2.bf16.msra.mxu0 0
    %276 = vmatprep.mubr.bf16.mxu0 0
    %277 = vmatmul.mubr.bf16.gmra.mxu0 %v242
    %v278 = vpop.f32.mrf.mxu0
    %v279 = vadd.f32 0.0, %v278
    %v280 = vpop.f32.mrf.mxu0
    %v281 = vpop.f32.mrf.mxu0
    %v282 = vadd.f32 0.0, %v281
    %v283 = vpop.f32.mrf.mxu0
    %284 = vdwg.mxu0
    %v286 = vsel %vm240, %v231, 0
    %288 = vmatprep.subr.bf16.mxu0 0
    %289 = vmatpush1.bf16.msra.mxu0 0
    %290 = vmatprep.subr.bf16.mxu0 0
    %291 = vmatpush1.bf16.msra.mxu0 0
    %292 = vmatprep.subr.bf16.mxu0 0
    %293 = vmatpush1.bf16.msra.mxu0 0
    %294 = vmatprep.subr.bf16.mxu0 0
    %295 = vmatpush1.bf16.msra.mxu0 0
    %296 = vmatprep.subr.bf16.mxu0 0
    %297 = vmatpush1.bf16.msra.mxu0 0
    %298 = vmatprep.subr.bf16.mxu0 0
    %299 = vmatpush1.bf16.msra.mxu0 0
    %300 = vmatprep.subr.bf16.mxu0 0
    %301 = vmatpush1.bf16.msra.mxu0 %v233
    %302 = vmatprep.subr.bf16.mxu0 0
    %303 = vmatpush1.bf16.msra.mxu0 %v232
    %304 = vmatprep.subr.bf16.mxu0 0
    %305 = vmatpush2.bf16.msra.mxu0 0
    %306 = vmatprep.subr.bf16.mxu0 0
    %307 = vmatpush2.bf16.msra.mxu0 0
    %308 = vmatprep.subr.bf16.mxu0 0
    %309 = vmatpush2.bf16.msra.mxu0 0
    %310 = vmatprep.subr.bf16.mxu0 0
    %311 = vmatpush2.bf16.msra.mxu0 0
    %312 = vmatprep.subr.bf16.mxu0 0
    %313 = vmatpush2.bf16.msra.mxu0 0
    %314 = vmatprep.subr.bf16.mxu0 0
    %315 = vmatpush2.bf16.msra.mxu0 0
    %316 = vmatprep.subr.bf16.mxu0 0
    %317 = vmatpush2.bf16.msra.mxu0 0
    %318 = vmatprep.subr.bf16.mxu0 0
    %319 = vmatpush2.bf16.msra.mxu0 0
    %320 = vmatprep.mubr.bf16.mxu0 0
    %321 = vmatmul.mubr.bf16.gmra.mxu0 %v286
    %v322 = vpop.f32.mrf.mxu0
    %v323 = vadd.f32 %v279, %v322
    %v324 = vpop.f32.mrf.mxu0
    %v325 = vpop.f32.mrf.mxu0
    %v326 = vadd.f32 %v282, %v325
    %v327 = vpop.f32.mrf.mxu0
    %328 = vdwg.mxu0
    %v329 = vld [vmem:[#allocation2 + $0x68] sm:$0x1]
    %v330 = vlaneseq
    %v331 = vshrl.u32 %v330, 7
    %v332 = vsub.s32 0, %v331
    %v333 = vrot.slane %v329, %v332
    %v334 = vadd.f32 %v323, %v333
    %v335 = vadd.f32 %v326, %v333
    %v336 = vmax.f32 %v334, 0.0
    %v337 = vmax.f32 %v335, 0.0
    %vm338 = vcmask 64512
    %v339 = vsel %vm338, %v336, 0.0
    %v340 = vsel %vm338, %v337, 0.0
    %v341 = vadd.f32 %v339, %v340
    %v342 = vrot.slane %v341, 4
    %v343 = vadd.f32 %v341, %v342
    %v344 = vrot.slane %v343, 2
    %v345 = vadd.f32 %v343, %v344
    %v346 = vrot.slane %v345, 1
    %v347 = vadd.f32 %v345, %v346
    %v348 = vmul.f32 %v347, 0.0625
    %v349 = vmul.f32 %v336, %v336
    %v350 = vmul.f32 %v337, %v337
    %v351 = vsel %vm338, %v349, 0.0
    %v352 = vsel %vm338, %v350, 0.0
    %v353 = vadd.f32 %v351, %v352
    %v354 = vrot.slane %v353, 4
    %v355 = vadd.f32 %v353, %v354
    %v356 = vrot.slane %v355, 2
    %v357 = vadd.f32 %v355, %v356
    %v358 = vrot.slane %v357, 1
    %v359 = vadd.f32 %v357, %v358
    %v360 = vmul.f32 %v359, 0.0625
    %v361 = vmul.f32 %v348, %v348
    %v362 = vsub.f32 %v360, %v361
    %v363 = vadd.f32 %v362, 1e-05
    %v364 = vrsqrt.pop %v363
    %v365 = vld [vmem:[#allocation2 + $0x70] sm:$0x1]
    %v366 = vmul.f32 %v364, %v365
    %v367 = vsub.f32 %v336, %v348
    %v368 = vsub.f32 %v337, %v348
    %v369 = vlaneseq
    %v370 = vshrl.u32 %v369, 7
    %v371 = vsub.s32 0, %v370
    %v372 = vrot.slane %v366, %v371
    %v373 = vmul.f32 %v367, %v372
    %v374 = vmul.f32 %v368, %v372
    %v375 = vld [vmem:[#allocation2 + $0x78] sm:$0x1]
    %v376 = vlaneseq
    %v377 = vshrl.u32 %v376, 7
    %v378 = vsub.s32 0, %v377
    %v379 = vrot.slane %v375, %v378
    %v380 = vadd.f32 %v373, %v379
    %v381 = vadd.f32 %v374, %v379
    %v382 = vmax.f32 %v380, 0.0
    %v383 = vmax.f32 %v381, 0.0
    %v384 = vpack.c.bf16 %v383, %v382
    %385 = vmatprep.subr.bf16.mxu0 0
    %386 = vmatpush1.bf16.msra.mxu0 0
    %387 = vmatprep.subr.bf16.mxu0 0
    %388 = vmatpush1.bf16.msra.mxu0 0
    %389 = vmatprep.subr.bf16.mxu0 0
    %390 = vmatpush1.bf16.msra.mxu0 0
    %391 = vmatprep.subr.bf16.mxu0 0
    %392 = vmatpush1.bf16.msra.mxu0 0
    %393 = vmatprep.subr.bf16.mxu0 0
    %394 = vmatpush1.bf16.msra.mxu0 0
    %395 = vmatprep.subr.bf16.mxu0 0
    %396 = vmatpush1.bf16.msra.mxu0 0
    %397 = vmatprep.subr.bf16.mxu0 0
    %398 = vmatpush1.bf16.msra.mxu0 0
    %399 = vmatprep.subr.bf16.mxu0 0
    %400 = vmatpush1.bf16.msra.mxu0 %v384
    %401 = vmatprep.subr.bf16.mxu0 0
    %402 = vmatpush2.bf16.msra.mxu0 0
    %403 = vmatprep.subr.bf16.mxu0 0
    %404 = vmatpush2.bf16.msra.mxu0 0
    %405 = vmatprep.subr.bf16.mxu0 0
    %406 = vmatpush2.bf16.msra.mxu0 0
    %407 = vmatprep.subr.bf16.mxu0 0
    %408 = vmatpush2.bf16.msra.mxu0 0
    %409 = vmatprep.subr.bf16.mxu0 0
    %410 = vmatpush2.bf16.msra.mxu0 0
    %411 = vmatprep.subr.bf16.mxu0 0
    %412 = vmatpush2.bf16.msra.mxu0 0
    %413 = vmatprep.subr.bf16.mxu0 0
    %414 = vmatpush2.bf16.msra.mxu0 0
    %415 = vmatprep.subr.bf16.mxu0 0
    %416 = vmatpush2.bf16.msra.mxu0 0
    %417 = vmatprep.mubr.bf16.mxu0 0
    %418 = vmatmul.mubr.bf16.gmra.mxu0 %v38
    %v419 = vpop.f32.mrf.mxu0
    %v420 = vadd.f32 0.0, %v419
    %v421 = vpop.f32.mrf.mxu0
    %v422 = vpop.f32.mrf.mxu0
    %v423 = vadd.f32 0.0, %v422
    %v424 = vpop.f32.mrf.mxu0
    %425 = vdwg.mxu0
    %v426 = vld [vmem:[#allocation2 + $0x80] sm:$0xff]
    %v427 = vpack.c.bf16 %v423, %v420
    %v428 = vpack.c.bf16 %v426, %v426
    %v429 = vld [vmem:[#allocation2 + $0x88] sm:$0xff]
    %v430 = vpack.c.bf16 %v429, %v429
    %v432 = vsel %vm338, %v384, 0
    %vm434 = vcmask 1043456
    %v436 = vsel %vm434, %v430, 0
    %438 = vmatprep.subr.bf16.mxu0 0
    %439 = vmatpush1.bf16.msra.mxu0 0
    %440 = vmatprep.subr.bf16.mxu0 0
    %441 = vmatpush1.bf16.msra.mxu0 0
    %442 = vmatprep.subr.bf16.mxu0 0
    %443 = vmatpush1.bf16.msra.mxu0 0
    %444 = vmatprep.subr.bf16.mxu0 0
    %445 = vmatpush1.bf16.msra.mxu0 0
    %446 = vmatprep.subr.bf16.mxu0 0
    %447 = vmatpush1.bf16.msra.mxu0 0
    %448 = vmatprep.subr.bf16.mxu0 0
    %449 = vmatpush1.bf16.msra.mxu0 0
    %450 = vmatprep.subr.bf16.mxu0 0
    %451 = vmatpush1.bf16.msra.mxu0 0
    %452 = vmatprep.subr.bf16.mxu0 0
    %453 = vmatpush1.bf16.msra.mxu0 %v436
    %454 = vmatprep.subr.bf16.mxu0 0
    %455 = vmatpush2.bf16.msra.mxu0 0
    %456 = vmatprep.subr.bf16.mxu0 0
    %457 = vmatpush2.bf16.msra.mxu0 0
    %458 = vmatprep.subr.bf16.mxu0 0
    %459 = vmatpush2.bf16.msra.mxu0 0
    %460 = vmatprep.subr.bf16.mxu0 0
    %461 = vmatpush2.bf16.msra.mxu0 0
    %462 = vmatprep.subr.bf16.mxu0 0
    %463 = vmatpush2.bf16.msra.mxu0 0
    %464 = vmatprep.subr.bf16.mxu0 0
    %465 = vmatpush2.bf16.msra.mxu0 0
    %466 = vmatprep.subr.bf16.mxu0 0
    %467 = vmatpush2.bf16.msra.mxu0 0
    %468 = vmatprep.subr.bf16.mxu0 0
    %469 = vmatpush2.bf16.msra.mxu0 0
    %470 = vmatprep.mubr.bf16.mxu0 0
    %471 = vmatmul.mubr.bf16.gmra.mxu0 %v432
    %v472 = vpop.f32.mrf.mxu0
    %v473 = vadd.f32 0.0, %v472
    %v474 = vpop.f32.mrf.mxu0
    %v475 = vpop.f32.mrf.mxu0
    %v476 = vadd.f32 0.0, %v475
    %v477 = vpop.f32.mrf.mxu0
    %478 = vdwg.mxu0
    %v480 = vsel %vm338, %v427, 0
    %v483 = vsel %vm434, %v428, 0
    %485 = vmatprep.subr.bf16.mxu0 0
    %486 = vmatpush1.bf16.msra.mxu0 0
    %487 = vmatprep.subr.bf16.mxu0 0
    %488 = vmatpush1.bf16.msra.mxu0 0
    %489 = vmatprep.subr.bf16.mxu0 0
    %490 = vmatpush1.bf16.msra.mxu0 0
    %491 = vmatprep.subr.bf16.mxu0 0
    %492 = vmatpush1.bf16.msra.mxu0 0
    %493 = vmatprep.subr.bf16.mxu0 0
    %494 = vmatpush1.bf16.msra.mxu0 0
    %495 = vmatprep.subr.bf16.mxu0 0
    %496 = vmatpush1.bf16.msra.mxu0 0
    %497 = vmatprep.subr.bf16.mxu0 0
    %498 = vmatpush1.bf16.msra.mxu0 0
    %499 = vmatprep.subr.bf16.mxu0 0
    %500 = vmatpush1.bf16.msra.mxu0 %v483
    %501 = vmatprep.subr.bf16.mxu0 0
    %502 = vmatpush2.bf16.msra.mxu0 0
    %503 = vmatprep.subr.bf16.mxu0 0
    %504 = vmatpush2.bf16.msra.mxu0 0
    %505 = vmatprep.subr.bf16.mxu0 0
    %506 = vmatpush2.bf16.msra.mxu0 0
    %507 = vmatprep.subr.bf16.mxu0 0
    %508 = vmatpush2.bf16.msra.mxu0 0
    %509 = vmatprep.subr.bf16.mxu0 0
    %510 = vmatpush2.bf16.msra.mxu0 0
    %511 = vmatprep.subr.bf16.mxu0 0
    %512 = vmatpush2.bf16.msra.mxu0 0
    %513 = vmatprep.subr.bf16.mxu0 0
    %514 = vmatpush2.bf16.msra.mxu0 0
    %515 = vmatprep.subr.bf16.mxu0 0
    %516 = vmatpush2.bf16.msra.mxu0 0
    %517 = vmatprep.mubr.bf16.mxu0 0
    %518 = vmatmul.mubr.bf16.gmra.mxu0 %v480
    %v519 = vpop.f32.mrf.mxu0
    %v520 = vadd.f32 %v473, %v519
    %v521 = vpop.f32.mrf.mxu0
    %v522 = vpop.f32.mrf.mxu0
    %v523 = vadd.f32 %v476, %v522
    %v524 = vpop.f32.mrf.mxu0
    %525 = vdwg.mxu0
    %v526 = vld [vmem:[#allocation2 + $0x90] sm:$0x1]
    %v527 = vlaneseq
    %v528 = vshrl.u32 %v527, 7
    %v529 = vsub.s32 0, %v528
    %v530 = vrot.slane %v526, %v529
    %v531 = vadd.f32 %v520, %v530
    %v532 = vadd.f32 %v523, %v530
    %v533 = vmax.f32 %v531, 0.0
    %v534 = vmax.f32 %v532, 0.0
    %v535 = vld [vmem:[#allocation2 + $0x98] sm:$0xff]
    %v536 = vld [vmem:[#allocation2 + $0xa0] sm:$0xff]
    %v537 = vld [vmem:[#allocation2 + $0xa8] sm:$0xff]
    %v538 = vld [vmem:[#allocation2 + $0xb0] sm:$0xff]
    %v539 = vpack.c.bf16 %v536, %v535
    %v540 = vpack.c.bf16 %v538, %v537
    %v541 = vld [vmem:[#allocation2 + $0xb8] sm:$0xff]
    %v542 = vpack.c.bf16 %v541, %v541
    %v544 = vsel %vm434, %v542, 0
    %546 = vmatprep.subr.bf16.mxu0 0
    %547 = vmatpush1.bf16.msra.mxu0 0
    %548 = vmatprep.subr.bf16.mxu0 0
    %549 = vmatpush1.bf16.msra.mxu0 0
    %550 = vmatprep.subr.bf16.mxu0 0
    %551 = vmatpush1.bf16.msra.mxu0 0
    %552 = vmatprep.subr.bf16.mxu0 0
    %553 = vmatpush1.bf16.msra.mxu0 0
    %554 = vmatprep.subr.bf16.mxu0 0
    %555 = vmatpush1.bf16.msra.mxu0 0
    %556 = vmatprep.subr.bf16.mxu0 0
    %557 = vmatpush1.bf16.msra.mxu0 0
    %558 = vmatprep.subr.bf16.mxu0 0
    %559 = vmatpush1.bf16.msra.mxu0 0
    %560 = vmatprep.subr.bf16.mxu0 0
    %561 = vmatpush1.bf16.msra.mxu0 %v544
    %562 = vmatprep.subr.bf16.mxu0 0
    %563 = vmatpush2.bf16.msra.mxu0 0
    %564 = vmatprep.subr.bf16.mxu0 0
    %565 = vmatpush2.bf16.msra.mxu0 0
    %566 = vmatprep.subr.bf16.mxu0 0
    %567 = vmatpush2.bf16.msra.mxu0 0
    %568 = vmatprep.subr.bf16.mxu0 0
    %569 = vmatpush2.bf16.msra.mxu0 0
    %570 = vmatprep.subr.bf16.mxu0 0
    %571 = vmatpush2.bf16.msra.mxu0 0
    %572 = vmatprep.subr.bf16.mxu0 0
    %573 = vmatpush2.bf16.msra.mxu0 0
    %574 = vmatprep.subr.bf16.mxu0 0
    %575 = vmatpush2.bf16.msra.mxu0 0
    %576 = vmatprep.subr.bf16.mxu0 0
    %577 = vmatpush2.bf16.msra.mxu0 0
    %578 = vmatprep.mubr.bf16.mxu0 0
    %579 = vmatmul.mubr.bf16.gmra.mxu0 %v432
    %v580 = vpop.f32.mrf.mxu0
    %v581 = vadd.f32 0.0, %v580
    %v582 = vpop.f32.mrf.mxu0
    %v583 = vpop.f32.mrf.mxu0
    %v584 = vadd.f32 0.0, %v583
    %v585 = vpop.f32.mrf.mxu0
    %586 = vdwg.mxu0
    %587 = vmatprep.subr.bf16.mxu0 0
    %588 = vmatpush1.bf16.msra.mxu0 0
    %589 = vmatprep.subr.bf16.mxu0 0
    %590 = vmatpush1.bf16.msra.mxu0 0
    %591 = vmatprep.subr.bf16.mxu0 0
    %592 = vmatpush1.bf16.msra.mxu0 0
    %593 = vmatprep.subr.bf16.mxu0 0
    %594 = vmatpush1.bf16.msra.mxu0 0
    %595 = vmatprep.subr.bf16.mxu0 0
    %596 = vmatpush1.bf16.msra.mxu0 0
    %597 = vmatprep.subr.bf16.mxu0 0
    %598 = vmatpush1.bf16.msra.mxu0 0
    %599 = vmatprep.subr.bf16.mxu0 0
    %600 = vmatpush1.bf16.msra.mxu0 %v540
    %601 = vmatprep.subr.bf16.mxu0 0
    %602 = vmatpush1.bf16.msra.mxu0 %v539
    %603 = vmatprep.subr.bf16.mxu0 0
    %604 = vmatpush2.bf16.msra.mxu0 0
    %605 = vmatprep.subr.bf16.mxu0 0
    %606 = vmatpush2.bf16.msra.mxu0 0
    %607 = vmatprep.subr.bf16.mxu0 0
    %608 = vmatpush2.bf16.msra.mxu0 0
    %609 = vmatprep.subr.bf16.mxu0 0
    %610 = vmatpush2.bf16.msra.mxu0 0
    %611 = vmatprep.subr.bf16.mxu0 0
    %612 = vmatpush2.bf16.msra.mxu0 0
    %613 = vmatprep.subr.bf16.mxu0 0
    %614 = vmatpush2.bf16.msra.mxu0 0
    %615 = vmatprep.subr.bf16.mxu0 0
    %616 = vmatpush2.bf16.msra.mxu0 0
    %617 = vmatprep.subr.bf16.mxu0 0
    %618 = vmatpush2.bf16.msra.mxu0 0
    %619 = vmatprep.mubr.bf16.mxu0 0
    %620 = vmatmul.mubr.bf16.gmra.mxu0 %v242
    %v621 = vpop.f32.mrf.mxu0
    %v622 = vadd.f32 %v581, %v621
    %v623 = vpop.f32.mrf.mxu0
    %v624 = vpop.f32.mrf.mxu0
    %v625 = vadd.f32 %v584, %v624
    %v626 = vpop.f32.mrf.mxu0
    %627 = vdwg.mxu0
    %v628 = vld [vmem:[#allocation2 + $0xc0] sm:$0xff]
    %v629 = vld [vmem:[#allocation2 + $0xc8] sm:$0xff]
    %v630 = vpack.c.bf16 %v534, %v533
    %v631 = vpack.c.bf16 %v629, %v628
    %v633 = vsel %vm36, %v630, 0
    %635 = vmatprep.subr.bf16.mxu0 0
    %636 = vmatpush1.bf16.msra.mxu0 0
    %637 = vmatprep.subr.bf16.mxu0 0
    %638 = vmatpush1.bf16.msra.mxu0 0
    %639 = vmatprep.subr.bf16.mxu0 0
    %640 = vmatpush1.bf16.msra.mxu0 0
    %641 = vmatprep.subr.bf16.mxu0 0
    %642 = vmatpush1.bf16.msra.mxu0 0
    %643 = vmatprep.subr.bf16.mxu0 0
    %644 = vmatpush1.bf16.msra.mxu0 0
    %645 = vmatprep.subr.bf16.mxu0 0
    %646 = vmatpush1.bf16.msra.mxu0 0
    %647 = vmatprep.subr.bf16.mxu0 0
    %648 = vmatpush1.bf16.msra.mxu0 0
    %649 = vmatprep.subr.bf16.mxu0 0
    %650 = vmatpush1.bf16.msra.mxu0 %v631
    %651 = vmatprep.subr.bf16.mxu0 0
    %652 = vmatpush2.bf16.msra.mxu0 0
    %653 = vmatprep.subr.bf16.mxu0 0
    %654 = vmatpush2.bf16.msra.mxu0 0
    %655 = vmatprep.subr.bf16.mxu0 0
    %656 = vmatpush2.bf16.msra.mxu0 0
    %657 = vmatprep.subr.bf16.mxu0 0
    %658 = vmatpush2.bf16.msra.mxu0 0
    %659 = vmatprep.subr.bf16.mxu0 0
    %660 = vmatpush2.bf16.msra.mxu0 0
    %661 = vmatprep.subr.bf16.mxu0 0
    %662 = vmatpush2.bf16.msra.mxu0 0
    %663 = vmatprep.subr.bf16.mxu0 0
    %664 = vmatpush2.bf16.msra.mxu0 0
    %665 = vmatprep.subr.bf16.mxu0 0
    %666 = vmatpush2.bf16.msra.mxu0 0
    %667 = vmatprep.mubr.bf16.mxu0 0
    %668 = vmatmul.mubr.bf16.gmra.mxu0 %v633
    %v669 = vpop.f32.mrf.mxu0
    %v670 = vadd.f32 0.0, %v669
    %v671 = vpop.f32.mrf.mxu0
    %v672 = vpop.f32.mrf.mxu0
    %v673 = vadd.f32 0.0, %v672
    %v674 = vpop.f32.mrf.mxu0
    %675 = vdwg.mxu0
    %v676 = vadd.f32 %v622, %v670
    %v677 = vadd.f32 %v625, %v673
    %v678 = vld [vmem:[#allocation2 + $0xd0] sm:$0x1]
    %v679 = vlaneseq
    %v680 = vshrl.u32 %v679, 7
    %v681 = vsub.s32 0, %v680
    %v682 = vrot.slane %v678, %v681
    %v683 = vadd.f32 %v676, %v682
    %v684 = vadd.f32 %v677, %v682
    %v685 = vmax.f32 %v683, 0.0
    %v686 = vmax.f32 %v684, 0.0
    %687 = vst.msk [vmem:[#allocation5] sm:$0xff] %vm36, %v685
    %688 = vst.msk [vmem:[#allocation5 + $0x8] sm:$0xff] %vm36, %v686
    // Predicated region
    $region18: #{fwd.1} parent=1 // pred_check
      _
    $region19: #{fwd.1} parent=1 // pred_check_branch
      %690 = sbr.rel (0) target = $region21
    $region20: #{fwd.1} parent=1 // pred_region
      %s692 = ssub.s32 256, 256
      %693 = vsyncadd [#allocation4], %s692
      %s694 = sshll.u32 [#allocation5], 4
      %s695 = int_to_ptr.vmem [resolvable:$true] %s694
      %700 = dma.vmem_to_hbm [thread:$0]  %s695, 256, %s3, [#allocation4], 128, 128, 8
    $region21: #{fwd.1} parent=1 // pred_fallthru
      _
    // Predicated region
    $region22: #{fwd.1} parent=1 // pred_check
      _
    $region23: #{fwd.1} parent=1 // pred_check_branch
      %702 = sbr.rel (0) target = $region25
    $region24: #{fwd.1} parent=1 // pred_region
      %703 = dma.done [#allocation4], 256
    $region25: #{fwd.1} parent=1 // pred_fallthru
      _
    %704 = vsyncpa [#allocation3], 1
    %705 = vsyncpa [#allocation4], 1

</llo_original>
